<compile_context>
chip_gen: v7x
topology: tpu7x:2x2x1
jax: 0.10.0
libtpu: 0.0.40
codegen_flags: <defaults>
</compile_context>

<pallas_src>
import jax
import jax.numpy as jnp
from jax.experimental import pallas as pl
from jax.experimental.pallas import tpu as pltpu


def _round_up(x, m):
    return (x + m - 1) // m * m


def qnet_kernel(x_ref, w1_ref, w2_ref, w3_ref, b1_ref, b2_ref, b3_ref, o_ref):
    # Layer 1: (TB, F) @ (F, 64) on the MXU (bf16 operands, f32 accumulation).
    x = x_ref[...].astype(jnp.bfloat16)
    h = jnp.dot(x, w1_ref[...], preferred_element_type=jnp.float32)
    h = jnp.maximum(h + b1_ref[...], 0.0)          # bias + ReLU in f32 (v5e-safe)

    # Layer 2: (TB, 64) @ (64, 64).
    h = jnp.dot(h.astype(jnp.bfloat16), w2_ref[...],
                preferred_element_type=jnp.float32)
    h = jnp.maximum(h + b2_ref[...], 0.0)

    # Layer 3 (no activation): (TB, 64) @ (64, A).
    out = jnp.dot(h.astype(jnp.bfloat16), w3_ref[...],
                  preferred_element_type=jnp.float32)
    o_ref[...] = (out + b3_ref[...]).astype(o_ref.dtype)


def _choose_block_rows(batch, max_rows_per_block):
    """Batch-tile height: the full batch if it is tiny (<=8 rows); otherwise a
    multiple of 8, capped at max_rows_per_block, and no larger than ~batch/2 so
    larger batches get >=2 grid steps (v7x megacore sharding of the parallel
    batch axis)."""
    if batch <= 8:
        return batch
    max_rows = max(8, _round_up(max_rows_per_block, 8))
    tb = _round_up(pl.cdiv(batch, 2), 8)
    return min(tb, max_rows)


def qnet_forward(x, params, *, max_rows_per_block=4096):
    """x: (B, n_features) f32; params: dict w1,b1,w2,b2,w3,b3 with weights stored
    as (in_features, out_features) and biases as (1, out_features)."""
    w1, b1, w2, b2, w3, b3 = (params[k] for k in ("w1", "b1", "w2", "b2", "w3", "b3"))
    B, F = x.shape
    H = w1.shape[1]
    A = w3.shape[1]

    TB = _choose_block_rows(B, max_rows_per_block)
    grid = (pl.cdiv(B, TB),)

    # Weights are tiny and VMEM-resident: one-time bf16 cast (MXU operands).
    w1p = w1.astype(jnp.bfloat16)
    w2p = w2.astype(jnp.bfloat16)
    w3p = w3.astype(jnp.bfloat16)
    b1p = b1.astype(jnp.float32)
    b2p = b2.astype(jnp.float32)
    b3p = b3.astype(jnp.float32)

    return pl.pallas_call(
        qnet_kernel,
        out_shape=jax.ShapeDtypeStruct((B, A), jnp.float32),
        grid=grid,
        in_specs=[
            pl.BlockSpec((TB, F), lambda i: (i, 0)),   # x: batch-tiled, full F (no pad)
            pl.BlockSpec((F, H), lambda i: (0, 0)),    # w1: VMEM-resident
            pl.BlockSpec((H, H), lambda i: (0, 0)),    # w2
            pl.BlockSpec((H, A), lambda i: (0, 0)),    # w3
            pl.BlockSpec((1, H), lambda i: (0, 0)),    # b1
            pl.BlockSpec((1, H), lambda i: (0, 0)),    # b2
            pl.BlockSpec((1, A), lambda i: (0, 0)),    # b3
        ],
        out_specs=pl.BlockSpec((TB, A), lambda i: (i, 0)),  # full-A block, no lane pad
        compiler_params=pltpu.CompilerParams(
            dimension_semantics=("parallel",),
            vmem_limit_bytes=32 * 1024 * 1024,
        ),
    )(x, w1p, w2p, w3p, b1p, b2p, b3p)


def init_qnet_params(key, n_features, n_actions, hidden=64):
    """Deterministic init mimicking PyTorch nn.Linear defaults (U(+-1/sqrt(fan_in))).
    Weights stored as (in_features, out_features); biases as (1, out_features)."""
    def linear(k, fan_in, fan_out):
        kw, kb = jax.random.split(k)
        bound = 1.0 / jnp.sqrt(jnp.float32(fan_in))
        w = jax.random.uniform(kw, (fan_in, fan_out), jnp.float32, -bound, bound)
        b = jax.random.uniform(kb, (1, fan_out), jnp.float32, -bound, bound)
        return w, b

    k1, k2, k3 = jax.random.split(key, 3)
    w1, b1 = linear(k1, n_features, hidden)
    w2, b2 = linear(k2, hidden, hidden)
    w3, b3 = linear(k3, hidden, n_actions)
    return {"w1": w1, "b1": b1, "w2": w2, "b2": b2, "w3": w3, "b3": b3}


def qnet_reference(x, params):
    h = jnp.maximum(x @ params["w1"] + params["b1"], 0.0)
    h = jnp.maximum(h @ params["w2"] + params["b2"], 0.0)
    return h @ params["w3"] + params["b3"]


if __name__ == "__main__":
    key = jax.random.PRNGKey(0)
    k_param, k_x = jax.random.split(key)

    # Small shapes consistent with QNet; batch=40 deliberately exercises the
    # multi-step grid (TB=24 -> 2 steps) and the masked partial final block.
    batch = 40
    n_features = 16
    n_actions = 4

    params = init_qnet_params(k_param, n_features, n_actions)
    x = jax.random.normal(k_x, (batch, n_features), jnp.float32)

    out = qnet_forward(x, params)
    out = jax.block_until_ready(out)

    ref = qnet_reference(x, params)
    assert out.shape == (batch, n_actions), out.shape
    # bf16 MXU operands with f32 accumulation -> compare loosely vs f32 reference.
    assert jnp.allclose(out, ref, atol=5e-2, rtol=5e-2), (
        "mismatch vs JAX reference; max abs err "
        f"{jnp.max(jnp.abs(out - ref))}"
    )

    print("KERNEL_OK")
</pallas_src>

<mosaic_0001>
module attributes {stable_mosaic.version = 11 : i64} {
  func.func @qnet_kernel(%arg0: i32, %arg1: memref<24x16xf32, #tpu.memory_space<vmem>>, %arg2: memref<16x64xbf16, #tpu.memory_space<vmem>>, %arg3: memref<64x64xbf16, #tpu.memory_space<vmem>>, %arg4: memref<64x4xbf16, #tpu.memory_space<vmem>>, %arg5: memref<1x64xf32, #tpu.memory_space<vmem>>, %arg6: memref<1x64xf32, #tpu.memory_space<vmem>>, %arg7: memref<1x4xf32, #tpu.memory_space<vmem>>, %arg8: memref<24x4xf32, #tpu.memory_space<vmem>>) attributes {dimension_semantics = [#tpu.dimension_semantics<parallel>], iteration_bounds = array<i64: 2>, scalar_prefetch = 0 : i64, scratch_operands = 0 : i64, tpu.core_type = #tpu.core_type<tc>, window_params = [{transform_indices = @transform_0, window_bounds = array<i64: 24, 16>}, {pipeline_mode = #tpu.pipeline_mode<synchronous>, transform_indices = @transform_1, window_bounds = array<i64: 16, 64>}, {pipeline_mode = #tpu.pipeline_mode<synchronous>, transform_indices = @transform_2, window_bounds = array<i64: 64, 64>}, {pipeline_mode = #tpu.pipeline_mode<synchronous>, transform_indices = @transform_3, window_bounds = array<i64: 64, 4>}, {pipeline_mode = #tpu.pipeline_mode<synchronous>, transform_indices = @transform_4, window_bounds = array<i64: 1, 64>}, {pipeline_mode = #tpu.pipeline_mode<synchronous>, transform_indices = @transform_5, window_bounds = array<i64: 1, 64>}, {pipeline_mode = #tpu.pipeline_mode<synchronous>, transform_indices = @transform_6, window_bounds = array<i64: 1, 4>}, {transform_indices = @transform_7, window_bounds = array<i64: 24, 4>}]} {
    %c0 = arith.constant 0 : index
    %c0_0 = arith.constant 0 : index
    %0 = vector.load %arg1[%c0, %c0_0] : memref<24x16xf32, #tpu.memory_space<vmem>>, vector<24x16xf32>
    %1 = arith.truncf %0 : vector<24x16xf32> to vector<24x16xbf16>
    %c0_1 = arith.constant 0 : index
    %c0_2 = arith.constant 0 : index
    %2 = vector.load %arg2[%c0_1, %c0_2] : memref<16x64xbf16, #tpu.memory_space<vmem>>, vector<16x64xbf16>
    %cst = arith.constant dense<0.000000e+00> : vector<24x64xf32>
    %3 = tpu.matmul %1, %2, %cst {dimension_numbers = #tpu.dot_dimension_numbers<[1], [0], [0], [1], [0, 0, 1, 1], [], []>} : vector<24x16xbf16>, vector<16x64xbf16>, vector<24x64xf32> -> vector<24x64xf32>
    %c0_3 = arith.constant 0 : index
    %c0_4 = arith.constant 0 : index
    %4 = vector.load %arg5[%c0_3, %c0_4] : memref<1x64xf32, #tpu.memory_space<vmem>>, vector<1x64xf32>
    %5 = vector.broadcast %4 : vector<1x64xf32> to vector<24x64xf32>
    %6 = arith.addf %3, %5 : vector<24x64xf32>
    %cst_5 = arith.constant 0.000000e+00 : f32
    %7 = vector.broadcast %cst_5 : f32 to vector<24x64xf32>
    %8 = arith.maximumf %6, %7 : vector<24x64xf32>
    %9 = arith.truncf %8 : vector<24x64xf32> to vector<24x64xbf16>
    %c0_6 = arith.constant 0 : index
    %c0_7 = arith.constant 0 : index
    %10 = vector.load %arg3[%c0_6, %c0_7] : memref<64x64xbf16, #tpu.memory_space<vmem>>, vector<64x64xbf16>
    %cst_8 = arith.constant dense<0.000000e+00> : vector<24x64xf32>
    %11 = tpu.matmul %9, %10, %cst_8 {dimension_numbers = #tpu.dot_dimension_numbers<[1], [0], [0], [1], [0, 0, 1, 1], [], []>} : vector<24x64xbf16>, vector<64x64xbf16>, vector<24x64xf32> -> vector<24x64xf32>
    %c0_9 = arith.constant 0 : index
    %c0_10 = arith.constant 0 : index
    %12 = vector.load %arg6[%c0_9, %c0_10] : memref<1x64xf32, #tpu.memory_space<vmem>>, vector<1x64xf32>
    %13 = vector.broadcast %12 : vector<1x64xf32> to vector<24x64xf32>
    %14 = arith.addf %11, %13 : vector<24x64xf32>
    %cst_11 = arith.constant 0.000000e+00 : f32
    %15 = vector.broadcast %cst_11 : f32 to vector<24x64xf32>
    %16 = arith.maximumf %14, %15 : vector<24x64xf32>
    %17 = arith.truncf %16 : vector<24x64xf32> to vector<24x64xbf16>
    %c0_12 = arith.constant 0 : index
    %c0_13 = arith.constant 0 : index
    %18 = vector.load %arg4[%c0_12, %c0_13] : memref<64x4xbf16, #tpu.memory_space<vmem>>, vector<64x4xbf16>
    %cst_14 = arith.constant dense<0.000000e+00> : vector<24x4xf32>
    %19 = tpu.matmul %17, %18, %cst_14 {dimension_numbers = #tpu.dot_dimension_numbers<[1], [0], [0], [1], [0, 0, 1, 1], [], []>} : vector<24x64xbf16>, vector<64x4xbf16>, vector<24x4xf32> -> vector<24x4xf32>
    %c0_15 = arith.constant 0 : index
    %c0_16 = arith.constant 0 : index
    %20 = vector.load %arg7[%c0_15, %c0_16] : memref<1x4xf32, #tpu.memory_space<vmem>>, vector<1x4xf32>
    %21 = vector.broadcast %20 : vector<1x4xf32> to vector<24x4xf32>
    %22 = arith.addf %19, %21 : vector<24x4xf32>
    %c0_17 = arith.constant 0 : index
    %c0_18 = arith.constant 0 : index
    %23 = vector.load %arg8[%c0_17, %c0_18] : memref<24x4xf32, #tpu.memory_space<vmem>>, vector<24x4xf32>
    tpu.vector_store %arg8[%c0_17, %c0_18], %22 {strides = array<i32>} : memref<24x4xf32, #tpu.memory_space<vmem>>, vector<24x4xf32>,
    return
  }
  func.func @transform_0(%arg0: i32) -> (i32, i32) {
    %c0_i32 = arith.constant 0 : i32
    %c0_i32_0 = arith.constant 0 : i32
    return %arg0, %c0_i32 : i32, i32
  }
  func.func @transform_1(%arg0: i32) -> (i32, i32) {
    %c0_i32 = arith.constant 0 : i32
    %c0_i32_0 = arith.constant 0 : i32
    %c0_i32_1 = arith.constant 0 : i32
    return %c0_i32, %c0_i32_0 : i32, i32
  }
  func.func @transform_2(%arg0: i32) -> (i32, i32) {
    %c0_i32 = arith.constant 0 : i32
    %c0_i32_0 = arith.constant 0 : i32
    %c0_i32_1 = arith.constant 0 : i32
    return %c0_i32, %c0_i32_0 : i32, i32
  }
  func.func @transform_3(%arg0: i32) -> (i32, i32) {
    %c0_i32 = arith.constant 0 : i32
    %c0_i32_0 = arith.constant 0 : i32
    %c0_i32_1 = arith.constant 0 : i32
    return %c0_i32, %c0_i32_0 : i32, i32
  }
  func.func @transform_4(%arg0: i32) -> (i32, i32) {
    %c0_i32 = arith.constant 0 : i32
    %c0_i32_0 = arith.constant 0 : i32
    %c0_i32_1 = arith.constant 0 : i32
    return %c0_i32, %c0_i32_0 : i32, i32
  }
  func.func @transform_5(%arg0: i32) -> (i32, i32) {
    %c0_i32 = arith.constant 0 : i32
    %c0_i32_0 = arith.constant 0 : i32
    %c0_i32_1 = arith.constant 0 : i32
    return %c0_i32, %c0_i32_0 : i32, i32
  }
  func.func @transform_6(%arg0: i32) -> (i32, i32) {
    %c0_i32 = arith.constant 0 : i32
    %c0_i32_0 = arith.constant 0 : i32
    %c0_i32_1 = arith.constant 0 : i32
    return %c0_i32, %c0_i32_0 : i32, i32
  }
  func.func @transform_7(%arg0: i32) -> (i32, i32) {
    %c0_i32 = arith.constant 0 : i32
    %c0_i32_0 = arith.constant 0 : i32
    return %arg0, %c0_i32 : i32, i32
  }
}

</mosaic_0001>

<llo_original>
// kernel: tpu_custom_call.1
$region0: #{tpu_custom_call.1}
  #allocation0 [shape = 'u32[]', space=smem, size = 0x4, offset = 0x4, fixed_abs, tag = 'smem constant byte address 0x4 - core index']
  #allocation1 [shape = 'u32[144,128]{1,0:T(1,128)}', space=vmem, size = 0x12000, scoped, tag = 'internal scratch']
  %s0 = inlined_call_operand.vmem [shape: f32[40,16], index: 0, kind: input, shape index: {}]
  %s1 = inlined_call_operand.vmem [shape: bf16[16,64], index: 1, kind: input, shape index: {}]
  %s2 = inlined_call_operand.vmem [shape: bf16[64,64], index: 2, kind: input, shape index: {}]
  %s3 = inlined_call_operand.vmem [shape: bf16[64,4], index: 3, kind: input, shape index: {}]
  %s4 = inlined_call_operand.vmem [shape: f32[1,64], index: 4, kind: input, shape index: {}]
  %s5 = inlined_call_operand.vmem [shape: f32[1,64], index: 5, kind: input, shape index: {}]
  %s6 = inlined_call_operand.vmem [shape: f32[1,4], index: 6, kind: input, shape index: {}]
  %s7 = inlined_call_operand.vmem [shape: f32[40,4], index: 7, kind: output, shape index: {}]
  %s8 = sld [smem:[#allocation0]]
  $region109: #{tpu_custom_call.1} parent=0
    _
  %s10 = ssub.s32 1, %s8
  %s11 = scalar_select 0, %s10, %s8
  $region1: #{tpu_custom_call.1} parent=0
    #allocation2 [shape = 'u8[24576]{0}', space=vmem, size = 0x6000, scoped, tag = 'output window, operand 0']
    loop: start=0, step=1, limit=4
    $region2: #{tpu_custom_call.1} parent=1 // loop_pre_header
      _
    $region3: #{tpu_custom_call.1} parent=1 // loop_header
      %s13 = sphi 0, %s17
      %p14 = scmp.ge.s32.totalorder %s13, 4
      %s23 = sphi 0, %s25
      %s26 = sphi 0, %s23
      %s27 = sphi 0, %s26
      %s43 = sphi 0, %s27
      %s47 = sphi 0, %s47
      %s49 = sphi 0, %s47
      %s50 = sphi 0, %s49
      %s64 = sphi 0, %s50
      %s68 = sphi 0, %s68
      %s70 = sphi 0, %s68
      %s71 = sphi 0, %s70
      %s85 = sphi 0, %s71
      %s89 = sphi 0, %s89
      %s91 = sphi 0, %s89
      %s92 = sphi 0, %s91
      %s106 = sphi 0, %s92
      %s110 = sphi 0, %s110
      %s112 = sphi 0, %s110
      %s113 = sphi 0, %s112
      %s127 = sphi 0, %s113
      %s131 = sphi 0, %s131
      %s133 = sphi 0, %s131
      %s134 = sphi 0, %s133
      %s148 = sphi 0, %s134
      %s152 = sphi 0, %s152
      %s154 = sphi 0, %s152
      %s155 = sphi 0, %s154
      %s169 = sphi 0, %s155
      %s175 = sphi 0, %s177
      %s178 = sphi 0, %s175
      %s179 = sphi 0, %s178
      %s195 = sphi 0, %s179
    $region4: #{tpu_custom_call.1} parent=1 // loop_header_branch
      %16 = sbr.rel (%p14) target = $region8
    $region5: #{tpu_custom_call.1} parent=1 // loop_body
      %s18 = ssub.s32 %s13, 1
      %s19 = ssub.s32 %s13, 2
      %s20 = sadd.s32 %s13, 1
      %s21 = ssub.s32 %s13, %s20
      %p22 = scmp.eq.s32.totalorder %s21, 0
      %s24 = sadd.s32 %s23, 1
      %s25 = scalar_select %p22, %s23, %s24
      %p28 = pneg %p22
      %p29 = scmp.eq.s32.totalorder %s13, 1
      %p30 = por %p28, %p29
      %p31 = scmp.ne.s32.totalorder %s23, %s26
      %p32 = scmp.eq.s32.totalorder %s13, 0
      %p33 = por %p31, %p32
      %p34 = scmp.ne.s32.totalorder %s23, %s26
      %p35 = scmp.eq.s32.totalorder %s18, 1
      %p36 = por %p34, %p35
      %p37 = scmp.ne.s32.totalorder %s26, %s27
      %p38 = scmp.eq.s32.totalorder %s18, 0
      %p39 = por %p37, %p38
      %p40 = scmp.ne.s32.totalorder %s26, %s27
      %p41 = scmp.eq.s32.totalorder %s19, 1
      %p42 = por %p40, %p41
      %p44 = scmp.ne.s32.totalorder %s27, %s43
      %p45 = scmp.eq.s32.totalorder %s19, 0
      %p46 = por %p44, %p45
      %s48 = sadd.s32 %s47, 1
      %p51 = scmp.eq.s32.totalorder %s13, 1
      %p52 = scmp.ne.s32.totalorder %s47, %s49
      %p53 = scmp.eq.s32.totalorder %s13, 0
      %p54 = por %p52, %p53
      %p55 = scmp.ne.s32.totalorder %s47, %s49
      %p56 = scmp.eq.s32.totalorder %s18, 1
      %p57 = por %p55, %p56
      %p58 = scmp.ne.s32.totalorder %s49, %s50
      %p59 = scmp.eq.s32.totalorder %s18, 0
      %p60 = por %p58, %p59
      %p61 = scmp.ne.s32.totalorder %s49, %s50
      %p62 = scmp.eq.s32.totalorder %s19, 1
      %p63 = por %p61, %p62
      %p65 = scmp.ne.s32.totalorder %s50, %s64
      %p66 = scmp.eq.s32.totalorder %s19, 0
      %p67 = por %p65, %p66
      %s69 = sadd.s32 %s68, 1
      %p72 = scmp.eq.s32.totalorder %s13, 1
      %p73 = scmp.ne.s32.totalorder %s68, %s70
      %p74 = scmp.eq.s32.totalorder %s13, 0
      %p75 = por %p73, %p74
      %p76 = scmp.ne.s32.totalorder %s68, %s70
      %p77 = scmp.eq.s32.totalorder %s18, 1
      %p78 = por %p76, %p77
      %p79 = scmp.ne.s32.totalorder %s70, %s71
      %p80 = scmp.eq.s32.totalorder %s18, 0
      %p81 = por %p79, %p80
      %p82 = scmp.ne.s32.totalorder %s70, %s71
      %p83 = scmp.eq.s32.totalorder %s19, 1
      %p84 = por %p82, %p83
      %p86 = scmp.ne.s32.totalorder %s71, %s85
      %p87 = scmp.eq.s32.totalorder %s19, 0
      %p88 = por %p86, %p87
      %s90 = sadd.s32 %s89, 1
      %p93 = scmp.eq.s32.totalorder %s13, 1
      %p94 = scmp.ne.s32.totalorder %s89, %s91
      %p95 = scmp.eq.s32.totalorder %s13, 0
      %p96 = por %p94, %p95
      %p97 = scmp.ne.s32.totalorder %s89, %s91
      %p98 = scmp.eq.s32.totalorder %s18, 1
      %p99 = por %p97, %p98
      %p100 = scmp.ne.s32.totalorder %s91, %s92
      %p101 = scmp.eq.s32.totalorder %s18, 0
      %p102 = por %p100, %p101
      %p103 = scmp.ne.s32.totalorder %s91, %s92
      %p104 = scmp.eq.s32.totalorder %s19, 1
      %p105 = por %p103, %p104
      %p107 = scmp.ne.s32.totalorder %s92, %s106
      %p108 = scmp.eq.s32.totalorder %s19, 0
      %p109 = por %p107, %p108
      %s111 = sadd.s32 %s110, 1
      %p114 = scmp.eq.s32.totalorder %s13, 1
      %p115 = scmp.ne.s32.totalorder %s110, %s112
      %p116 = scmp.eq.s32.totalorder %s13, 0
      %p117 = por %p115, %p116
      %p118 = scmp.ne.s32.totalorder %s110, %s112
      %p119 = scmp.eq.s32.totalorder %s18, 1
      %p120 = por %p118, %p119
      %p121 = scmp.ne.s32.totalorder %s112, %s113
      %p122 = scmp.eq.s32.totalorder %s18, 0
      %p123 = por %p121, %p122
      %p124 = scmp.ne.s32.totalorder %s112, %s113
      %p125 = scmp.eq.s32.totalorder %s19, 1
      %p126 = por %p124, %p125
      %p128 = scmp.ne.s32.totalorder %s113, %s127
      %p129 = scmp.eq.s32.totalorder %s19, 0
      %p130 = por %p128, %p129
      %s132 = sadd.s32 %s131, 1
      %p135 = scmp.eq.s32.totalorder %s13, 1
      %p136 = scmp.ne.s32.totalorder %s131, %s133
      %p137 = scmp.eq.s32.totalorder %s13, 0
      %p138 = por %p136, %p137
      %p139 = scmp.ne.s32.totalorder %s131, %s133
      %p140 = scmp.eq.s32.totalorder %s18, 1
      %p141 = por %p139, %p140
      %p142 = scmp.ne.s32.totalorder %s133, %s134
      %p143 = scmp.eq.s32.totalorder %s18, 0
      %p144 = por %p142, %p143
      %p145 = scmp.ne.s32.totalorder %s133, %s134
      %p146 = scmp.eq.s32.totalorder %s19, 1
      %p147 = por %p145, %p146
      %p149 = scmp.ne.s32.totalorder %s134, %s148
      %p150 = scmp.eq.s32.totalorder %s19, 0
      %p151 = por %p149, %p150
      %s153 = sadd.s32 %s152, 1
      %p156 = scmp.eq.s32.totalorder %s13, 1
      %p157 = scmp.ne.s32.totalorder %s152, %s154
      %p158 = scmp.eq.s32.totalorder %s13, 0
      %p159 = por %p157, %p158
      %p160 = scmp.ne.s32.totalorder %s152, %s154
      %p161 = scmp.eq.s32.totalorder %s18, 1
      %p162 = por %p160, %p161
      %p163 = scmp.ne.s32.totalorder %s154, %s155
      %p164 = scmp.eq.s32.totalorder %s18, 0
      %p165 = por %p163, %p164
      %p166 = scmp.ne.s32.totalorder %s154, %s155
      %p167 = scmp.eq.s32.totalorder %s19, 1
      %p168 = por %p166, %p167
      %p170 = scmp.ne.s32.totalorder %s155, %s169
      %p171 = scmp.eq.s32.totalorder %s19, 0
      %p172 = por %p170, %p171
      %s173 = ssub.s32 %s13, %s20
      %p174 = scmp.eq.s32.totalorder %s173, 0
      %s176 = sadd.s32 %s175, 1
      %s177 = scalar_select %p174, %s175, %s176
      %p180 = pneg %p174
      %p181 = scmp.eq.s32.totalorder %s13, 1
      %p182 = por %p180, %p181
      %p183 = scmp.ne.s32.totalorder %s175, %s178
      %p184 = scmp.eq.s32.totalorder %s13, 0
      %p185 = por %p183, %p184
      %p186 = scmp.ne.s32.totalorder %s175, %s178
      %p187 = scmp.eq.s32.totalorder %s18, 1
      %p188 = por %p186, %p187
      %p189 = scmp.ne.s32.totalorder %s178, %s179
      %p190 = scmp.eq.s32.totalorder %s18, 0
      %p191 = por %p189, %p190
      %p192 = scmp.ne.s32.totalorder %s178, %s179
      %p193 = scmp.eq.s32.totalorder %s19, 1
      %p194 = por %p192, %p193
      %p196 = scmp.ne.s32.totalorder %s179, %s195
      %p197 = scmp.eq.s32.totalorder %s19, 0
      %p198 = por %p196, %p197
      %p199 = scmp.le.s32.totalorder 1, %s13
      %p200 = scmp.lt.s32.totalorder %s13, 3
      %p201 = pnand %p199, %p200
      %p202 = pneg %p201
      // Predicated region
      $region9: #{tpu_custom_call.1} parent=5 // pred_check
        _
      $region10: #{tpu_custom_call.1} parent=5 // pred_check_branch
        %204 = sbr.rel (%p201) target = $region12
      $region11: #{tpu_custom_call.1} parent=5 // pred_region
        %s205 = ssub.s32 %s13, 1
        // Predicated region
        $region13: #{tpu_custom_call.1} parent=11 // pred_check
          %p206 = pneg %p60
        $region14: #{tpu_custom_call.1} parent=11 // pred_check_branch
          %208 = sbr.rel (%p206) target = $region16
        $region15: #{tpu_custom_call.1} parent=11 // pred_region
          _
        $region16: #{tpu_custom_call.1} parent=11 // pred_fallthru
          _
        // Predicated region
        $region17: #{tpu_custom_call.1} parent=11 // pred_check
          %p209 = pneg %p81
        $region18: #{tpu_custom_call.1} parent=11 // pred_check_branch
          %211 = sbr.rel (%p209) target = $region20
        $region19: #{tpu_custom_call.1} parent=11 // pred_region
          _
        $region20: #{tpu_custom_call.1} parent=11 // pred_fallthru
          _
        // Predicated region
        $region21: #{tpu_custom_call.1} parent=11 // pred_check
          %p212 = pneg %p102
        $region22: #{tpu_custom_call.1} parent=11 // pred_check_branch
          %214 = sbr.rel (%p212) target = $region24
        $region23: #{tpu_custom_call.1} parent=11 // pred_region
          _
        $region24: #{tpu_custom_call.1} parent=11 // pred_fallthru
          _
        // Predicated region
        $region25: #{tpu_custom_call.1} parent=11 // pred_check
          %p215 = pneg %p123
        $region26: #{tpu_custom_call.1} parent=11 // pred_check_branch
          %217 = sbr.rel (%p215) target = $region28
        $region27: #{tpu_custom_call.1} parent=11 // pred_region
          _
        $region28: #{tpu_custom_call.1} parent=11 // pred_fallthru
          _
        // Predicated region
        $region29: #{tpu_custom_call.1} parent=11 // pred_check
          %p218 = pneg %p144
        $region30: #{tpu_custom_call.1} parent=11 // pred_check_branch
          %220 = sbr.rel (%p218) target = $region32
        $region31: #{tpu_custom_call.1} parent=11 // pred_region
          _
        $region32: #{tpu_custom_call.1} parent=11 // pred_fallthru
          _
        // Predicated region
        $region33: #{tpu_custom_call.1} parent=11 // pred_check
          %p221 = pneg %p165
        $region34: #{tpu_custom_call.1} parent=11 // pred_check_branch
          %223 = sbr.rel (%p221) target = $region36
        $region35: #{tpu_custom_call.1} parent=11 // pred_region
          _
        $region36: #{tpu_custom_call.1} parent=11 // pred_fallthru
          _
      $region12: #{tpu_custom_call.1} parent=5 // pred_fallthru
        _
      %p224 = scmp.lt.s32.totalorder %s13, 2
      // Predicated region
      $region37: #{tpu_custom_call.1} parent=5 // pred_check
        %p225 = pneg %p224
      $region38: #{tpu_custom_call.1} parent=5 // pred_check_branch
        %227 = sbr.rel (%p225) target = $region40
      $region39: #{tpu_custom_call.1} parent=5 // pred_region
        // Predicated region
        $region41: #{tpu_custom_call.1} parent=39 // pred_check
          %p228 = pneg %p33
        $region42: #{tpu_custom_call.1} parent=39 // pred_check_branch
          %230 = sbr.rel (%p228) target = $region44
        $region43: #{tpu_custom_call.1} parent=39 // pred_region
          %s231 = smul.u32 3, %s13
          %s232 = ssub.s32 5, %s231
          %p233 = scmp.lt.s32.totalorder %s232, 3
          %s234 = scalar_select %p233, %s232, 3
          %s235 = smul.u32 128, %s234
          %p236 = scmp.lt.s32.totalorder %s231, 4
          %s237 = scalar_select %p236, %s231, 4
          %s238 = smul.addr %s237, 8
          %s239 = scalar_lea.vmem %s0, %s238
          %s240 = smul.u32 3, %s13
          %s241 = ssub.s32 5, %s240
          %p242 = scmp.lt.s32.totalorder %s241, 3
          %s243 = scalar_select %p242, %s241, 3
          %s244 = smul.u32 128, %s243
        $region44: #{tpu_custom_call.1} parent=39 // pred_fallthru
          _
      $region40: #{tpu_custom_call.1} parent=5 // pred_fallthru
        _
      %p245 = scmp.le.s32.totalorder 1, %s13
      %p246 = scmp.lt.s32.totalorder %s13, 3
      %p247 = pnand %p245, %p246
      %p248 = pneg %p247
      // Predicated region
      $region45: #{tpu_custom_call.1} parent=5 // pred_check
        _
      $region46: #{tpu_custom_call.1} parent=5 // pred_check_branch
        %250 = sbr.rel (%p247) target = $region48
      $region47: #{tpu_custom_call.1} parent=5 // pred_region
        %s251 = ssub.s32 %s13, 1
        %s252 = smul.u32 3, %s18
        %s253 = ssub.s32 5, %s252
        %p254 = scmp.lt.s32.totalorder %s253, 3
        %s255 = scalar_select %p254, %s253, 3
        %s256 = smul.u32 128, %s255
        %p257 = scmp.lt.s32.totalorder %s252, 4
        %s258 = scalar_select %p257, %s252, 4
        %s259 = smul.addr %s258, 8
        %s260 = scalar_lea.vmem %s0, %s259
        %p261 = pneg %p39
        %p262 = pneg %p36
        %p263 = pneg %p60
        %p264 = pneg %p57
        %p265 = pneg %p81
        %p266 = pneg %p78
        %p267 = pneg %p102
        %p268 = pneg %p99
        %p269 = pneg %p123
        %p270 = pneg %p120
        %p271 = pneg %p144
        %p272 = pneg %p141
        %p273 = pneg %p165
        %p274 = pneg %p162
        %p275 = pneg %p191
        %p276 = pneg %p188
        %s277 = sand.u32 %s178, 1
        %s278 = sand.u32 %s178, 1
        %s279 = smul.addr %s278, 24
        %s280 = scalar_lea.vmem [#allocation2], %s279
        %s281 = smul.u32 3, %s18
        %s282 = ssub.s32 5, %s281
        %p283 = scmp.lt.s32.totalorder %s282, 3
        %s284 = scalar_select %p283, %s282, 3
        %s285 = smul.u32 128, %s284
        %p286 = scmp.lt.s32.totalorder %s281, 4
        %s287 = scalar_select %p286, %s281, 4
        %s288 = smul.addr %s287, 8
        %s289 = scalar_lea.vmem %s0, %s288
        %s290 = smul.u32 3, %s18
        %s291 = ssub.s32 5, %s290
        %p292 = scmp.lt.s32.totalorder %s291, 3
        %s293 = scalar_select %p292, %s291, 3
        %s294 = smul.u32 128, %s293
        %s295 = smul.u32 3, %s18
        %s296 = ssub.s32 5, %s295
        %p297 = scmp.lt.s32.totalorder %s296, 3
        %s298 = scalar_select %p297, %s296, 3
        %s299 = smul.u32 128, %s298
        %v301 = vld [vmem:[%s289] sm:$0xff]
        %v302 = vld [vmem:[%s289 + $0x8] sm:$0xff]
        %v303 = vld [vmem:[%s289 + $0x10] sm:$0xff]
        %v304 = vpack.c.bf16 %v302, %v301
        %v305 = vpack.c.bf16 %v303, %v303
        %v306 = vld [vmem:[%s1] sm:$0xf]
        %v307 = vld [vmem:[%s1 + $0x4] sm:$0xf]
        %v308 = vld [vmem:[%s4] sm:$0x1]
        %v310 = vlaneseq
        %v311 = vshrl.u32 %v310, 7
        %v312 = vsub.s32 0, %v311
        %v313 = vrot.slane %v308, %v312
        %v317 = vunpack.c.l.b16 %v306
        %v318 = vunpack.c.l.b16 %v307
        %v319 = vpack.c.b16 %v318, %v317
        %vm321 = vcmask 130048
        %v323 = vsel %vm321, %v304, 0
        %v326 = vsel %vm321, %v305, 0
        %328 = vmatprep.subr.bf16.mxu0 0
        %329 = vmatpush1.bf16.msra.mxu0 %v319
        %330 = vmatprep.subr.bf16.mxu0 0
        %331 = vmatpush1.bf16.msra.mxu0 0
        %332 = vmatprep.subr.bf16.mxu0 0
        %333 = vmatpush1.bf16.msra.mxu0 0
        %334 = vmatprep.subr.bf16.mxu0 0
        %335 = vmatpush1.bf16.msra.mxu0 0
        %336 = vmatprep.subr.bf16.mxu0 0
        %337 = vmatpush1.bf16.msra.mxu0 0
        %338 = vmatprep.subr.bf16.mxu0 0
        %339 = vmatpush1.bf16.msra.mxu0 0
        %340 = vmatprep.subr.bf16.mxu0 0
        %341 = vmatpush1.bf16.msra.mxu0 0
        %342 = vmatprep.subr.bf16.mxu0 0
        %343 = vmatpush1.bf16.msra.mxu0 0
        %344 = vmatprep.subr.bf16.mxu0 0
        %345 = vmatpush1.bf16.msra.mxu0 0
        %346 = vmatprep.subr.bf16.mxu0 0
        %347 = vmatpush1.bf16.msra.mxu0 0
        %348 = vmatprep.subr.bf16.mxu0 0
        %349 = vmatpush1.bf16.msra.mxu0 0
        %350 = vmatprep.subr.bf16.mxu0 0
        %351 = vmatpush1.bf16.msra.mxu0 0
        %352 = vmatprep.subr.bf16.mxu0 0
        %353 = vmatpush1.bf16.msra.mxu0 0
        %354 = vmatprep.subr.bf16.mxu0 0
        %355 = vmatpush1.bf16.msra.mxu0 0
        %356 = vmatprep.subr.bf16.mxu0 0
        %357 = vmatpush1.bf16.msra.mxu0 0
        %358 = vmatprep.subr.bf16.mxu0 0
        %359 = vmatpush1.bf16.msra.mxu0 0
        %360 = vmatprep.mubr.bf16.mxu0 0
        %361 = vmatmul.mubr.bf16.gmra.mrb[0].mxu0 %v323
        %v362 = vpop.f32.mrb[0].mxu0
        %v363 = vadd.f32 %v313, %v362
        %v364 = vpop.f32.mrb[0].mxu0
        %v365 = vpop.f32.mrb[0].mxu0
        %v366 = vadd.f32 %v313, %v365
        %v367 = vpop.f32.mrb[0].mxu0
        %368 = vmatprep.mubr.bf16.mxu0 0
        %369 = vmatmul.mubr.bf16.gmra.mrb[0].mxu0 %v326
        %v370 = vpop.f32.mrb[0].mxu0
        %v371 = vadd.f32 %v313, %v370
        %v372 = vpop.f32.mrb[0].mxu0
        %v373 = vpop.f32.mrb[0].mxu0
        %v374 = vpop.f32.mrb[0].mxu0
        %375 = vdwg.mxu0
        %v376 = vmax.f32 %v363, 0.0
        %v377 = vmax.f32 %v366, 0.0
        %v378 = vmax.f32 %v371, 0.0
        %v379 = vpack.c.bf16 %v377, %v376
        %v380 = vpack.c.bf16 %v378, %v378
        %v381 = vld [vmem:[%s2] sm:$0xf]
        %v382 = vld [vmem:[%s2 + $0x4] sm:$0xf]
        %v383 = vld [vmem:[%s2 + $0x8] sm:$0xf]
        %v384 = vld [vmem:[%s2 + $0xc] sm:$0xf]
        %v385 = vld [vmem:[%s2 + $0x10] sm:$0xf]
        %v386 = vld [vmem:[%s2 + $0x14] sm:$0xf]
        %v387 = vld [vmem:[%s2 + $0x18] sm:$0xf]
        %v388 = vld [vmem:[%s2 + $0x1c] sm:$0xf]
        %v389 = vld [vmem:[%s5] sm:$0x1]
        %v391 = vlaneseq
        %v392 = vshrl.u32 %v391, 7
        %v393 = vsub.s32 0, %v392
        %v394 = vrot.slane %v389, %v393
        %v404 = vunpack.c.l.b16 %v381
        %v405 = vunpack.c.l.b16 %v382
        %v406 = vunpack.c.l.b16 %v383
        %v407 = vunpack.c.l.b16 %v384
        %v408 = vunpack.c.l.b16 %v385
        %v409 = vunpack.c.l.b16 %v386
        %v410 = vunpack.c.l.b16 %v387
        %v411 = vunpack.c.l.b16 %v388
        %v412 = vpack.c.b16 %v405, %v404
        %v413 = vpack.c.b16 %v407, %v406
        %v414 = vpack.c.b16 %v409, %v408
        %v415 = vpack.c.b16 %v411, %v410
        %vm420 = vcmask 523264
        %v422 = vsel %vm420, %v379, 0
        %v425 = vsel %vm420, %v380, 0
        %427 = vmatprep.subr.bf16.mxu0 0
        %428 = vmatpush1.bf16.msra.mxu0 %v412
        %429 = vmatprep.subr.bf16.mxu0 0
        %430 = vmatpush1.bf16.msra.mxu0 %v413
        %431 = vmatprep.subr.bf16.mxu0 0
        %432 = vmatpush1.bf16.msra.mxu0 %v414
        %433 = vmatprep.subr.bf16.mxu0 0
        %434 = vmatpush1.bf16.msra.mxu0 %v415
        %435 = vmatprep.subr.bf16.mxu0 0
        %436 = vmatpush1.bf16.msra.mxu0 0
        %437 = vmatprep.subr.bf16.mxu0 0
        %438 = vmatpush1.bf16.msra.mxu0 0
        %439 = vmatprep.subr.bf16.mxu0 0
        %440 = vmatpush1.bf16.msra.mxu0 0
        %441 = vmatprep.subr.bf16.mxu0 0
        %442 = vmatpush1.bf16.msra.mxu0 0
        %443 = vmatprep.subr.bf16.mxu0 0
        %444 = vmatpush1.bf16.msra.mxu0 0
        %445 = vmatprep.subr.bf16.mxu0 0
        %446 = vmatpush1.bf16.msra.mxu0 0
        %447 = vmatprep.subr.bf16.mxu0 0
        %448 = vmatpush1.bf16.msra.mxu0 0
        %449 = vmatprep.subr.bf16.mxu0 0
        %450 = vmatpush1.bf16.msra.mxu0 0
        %451 = vmatprep.subr.bf16.mxu0 0
        %452 = vmatpush1.bf16.msra.mxu0 0
        %453 = vmatprep.subr.bf16.mxu0 0
        %454 = vmatpush1.bf16.msra.mxu0 0
        %455 = vmatprep.subr.bf16.mxu0 0
        %456 = vmatpush1.bf16.msra.mxu0 0
        %457 = vmatprep.subr.bf16.mxu0 0
        %458 = vmatpush1.bf16.msra.mxu0 0
        %459 = vmatprep.mubr.bf16.mxu0 0
        %460 = vmatmul.mubr.bf16.gmra.mrb[0].mxu0 %v422
        %v461 = vpop.f32.mrb[0].mxu0
        %v462 = vadd.f32 %v394, %v461
        %v463 = vpop.f32.mrb[0].mxu0
        %v464 = vpop.f32.mrb[0].mxu0
        %v465 = vadd.f32 %v394, %v464
        %v466 = vpop.f32.mrb[0].mxu0
        %467 = vmatprep.mubr.bf16.mxu0 0
        %468 = vmatmul.mubr.bf16.gmra.mrb[0].mxu0 %v425
        %v469 = vpop.f32.mrb[0].mxu0
        %v470 = vadd.f32 %v394, %v469
        %v471 = vpop.f32.mrb[0].mxu0
        %v472 = vpop.f32.mrb[0].mxu0
        %v473 = vpop.f32.mrb[0].mxu0
        %474 = vdwg.mxu0
        %v475 = vmax.f32 %v462, 0.0
        %v476 = vmax.f32 %v465, 0.0
        %v477 = vmax.f32 %v470, 0.0
        %v478 = vpack.c.bf16 %v476, %v475
        %v479 = vpack.c.bf16 %v477, %v477
        %v480 = vld [vmem:[%s3] sm:$0xf]
        %v481 = vld [vmem:[%s3 + $0x4] sm:$0xf]
        %v482 = vld [vmem:[%s3 + $0x8] sm:$0xf]
        %v483 = vld [vmem:[%s3 + $0xc] sm:$0xf]
        %v484 = vld [vmem:[%s3 + $0x10] sm:$0xf]
        %v485 = vld [vmem:[%s3 + $0x14] sm:$0xf]
        %v486 = vld [vmem:[%s3 + $0x18] sm:$0xf]
        %v487 = vld [vmem:[%s3 + $0x1c] sm:$0xf]
        %v488 = vld [vmem:[%s6] sm:$0x1]
        %v490 = vlaneseq
        %v491 = vshrl.u32 %v490, 7
        %v492 = vsub.s32 0, %v491
        %v493 = vrot.slane %v488, %v492
        %v503 = vunpack.c.l.b16 %v480
        %v504 = vunpack.c.l.b16 %v481
        %v505 = vunpack.c.l.b16 %v482
        %v506 = vunpack.c.l.b16 %v483
        %v507 = vunpack.c.l.b16 %v484
        %v508 = vunpack.c.l.b16 %v485
        %v509 = vunpack.c.l.b16 %v486
        %v510 = vunpack.c.l.b16 %v487
        %v511 = vpack.c.b16 %v504, %v503
        %v512 = vpack.c.b16 %v506, %v505
        %v513 = vpack.c.b16 %v508, %v507
        %v514 = vpack.c.b16 %v510, %v509
        %v520 = vsel %vm420, %v478, 0
        %v523 = vsel %vm420, %v479, 0
        %525 = vmatprep.subr.bf16.mxu0 0
        %526 = vmatpush1.bf16.msra.mxu0 %v511
        %527 = vmatprep.subr.bf16.mxu0 0
        %528 = vmatpush1.bf16.msra.mxu0 %v512
        %529 = vmatprep.subr.bf16.mxu0 0
        %530 = vmatpush1.bf16.msra.mxu0 %v513
        %531 = vmatprep.subr.bf16.mxu0 0
        %532 = vmatpush1.bf16.msra.mxu0 %v514
        %533 = vmatprep.subr.bf16.mxu0 0
        %534 = vmatpush1.bf16.msra.mxu0 0
        %535 = vmatprep.subr.bf16.mxu0 0
        %536 = vmatpush1.bf16.msra.mxu0 0
        %537 = vmatprep.subr.bf16.mxu0 0
        %538 = vmatpush1.bf16.msra.mxu0 0
        %539 = vmatprep.subr.bf16.mxu0 0
        %540 = vmatpush1.bf16.msra.mxu0 0
        %541 = vmatprep.subr.bf16.mxu0 0
        %542 = vmatpush1.bf16.msra.mxu0 0
        %543 = vmatprep.subr.bf16.mxu0 0
        %544 = vmatpush1.bf16.msra.mxu0 0
        %545 = vmatprep.subr.bf16.mxu0 0
        %546 = vmatpush1.bf16.msra.mxu0 0
        %547 = vmatprep.subr.bf16.mxu0 0
        %548 = vmatpush1.bf16.msra.mxu0 0
        %549 = vmatprep.subr.bf16.mxu0 0
        %550 = vmatpush1.bf16.msra.mxu0 0
        %551 = vmatprep.subr.bf16.mxu0 0
        %552 = vmatpush1.bf16.msra.mxu0 0
        %553 = vmatprep.subr.bf16.mxu0 0
        %554 = vmatpush1.bf16.msra.mxu0 0
        %555 = vmatprep.subr.bf16.mxu0 0
        %556 = vmatpush1.bf16.msra.mxu0 0
        %557 = vmatprep.mubr.bf16.mxu0 0
        %558 = vmatmul.mubr.bf16.gmra.mrb[0].mxu0 %v520
        %v559 = vpop.f32.mrb[0].mxu0
        %v560 = vadd.f32 %v493, %v559
        %v561 = vpop.f32.mrb[0].mxu0
        %v562 = vpop.f32.mrb[0].mxu0
        %v563 = vadd.f32 %v493, %v562
        %v564 = vpop.f32.mrb[0].mxu0
        %565 = vmatprep.mubr.bf16.mxu0 0
        %566 = vmatmul.mubr.bf16.gmra.mrb[0].mxu0 %v523
        %v567 = vpop.f32.mrb[0].mxu0
        %v568 = vadd.f32 %v493, %v567
        %v569 = vpop.f32.mrb[0].mxu0
        %v570 = vpop.f32.mrb[0].mxu0
        %v571 = vpop.f32.mrb[0].mxu0
        %572 = vdwg.mxu0
        %vm573 = vcmask 31744
        %574 = vst.msk [vmem:[%s280] sm:$0xff] %vm573, %v560
        %575 = vst.msk [vmem:[%s280 + $0x8] sm:$0xff] %vm573, %v563
        %576 = vst.msk [vmem:[%s280 + $0x10] sm:$0xff] %vm573, %v568
        %s577 = sand.u32 %s178, 1
        %s578 = sand.u32 %s178, 1
        %s579 = smul.addr %s578, 24
        %s580 = scalar_lea.vmem [#allocation2], %s579
        // Predicated region
        $region49: #{tpu_custom_call.1} parent=47 // pred_check
          %p581 = pneg %p188
        $region50: #{tpu_custom_call.1} parent=47 // pred_check_branch
          %583 = sbr.rel (%p581) target = $region52
        $region51: #{tpu_custom_call.1} parent=47 // pred_region
          %s584 = smul.u32 3, %s18
          %s585 = ssub.s32 5, %s584
          %p586 = scmp.lt.s32.totalorder %s585, 3
          %s587 = scalar_select %p586, %s585, 3
          %s588 = smul.u32 128, %s587
          %p589 = scmp.ne.s32.totalorder 0, %s588
          %s590 = smul.addr %s584, 8
          %s591 = scalar_lea.vmem %s7, %s590
          // Predicated region
          $region53: #{tpu_custom_call.1} parent=51 // pred_check
            %p592 = pneg %p589
          $region54: #{tpu_custom_call.1} parent=51 // pred_check_branch
            %594 = sbr.rel (%p592) target = $region56
          $region55: #{tpu_custom_call.1} parent=51 // pred_region
            // Predicated region
            $region57: #{tpu_custom_call.1} parent=55 // pred_check
              _
            $region58: #{tpu_custom_call.1} parent=55 // pred_check_branch
              %596 = sbr.rel (0) target = $region60
            $region59: #{tpu_custom_call.1} parent=55 // pred_region
              // Predicated region
              $region79: #{tpu_custom_call.1} parent=59 // pred_check
                _
              $region80: #{tpu_custom_call.1} parent=59 // pred_check_branch
                %650 = sbr.rel (0) target = $region82
              $region81: #{tpu_custom_call.1} parent=59 // pred_region
                %s651 = sdiv.u32.pop %s587, 3
                %s652 = srem.u32.pop %s587, 3
                // While loop
                $region83: #{tpu_custom_call.1} parent=81 // loop_pre_header
                  _
                $region84: #{tpu_custom_call.1} parent=81 // loop_header
                  %s654 = sphi 0, %s656
                  %p655 = scmp.ge.s32.totalorder %s654, %s651
                  %s659 = sphi 0, %s670
                  %s660 = sphi %s580, %s673
                  %s661 = sphi %s591, %s674
                $region85: #{tpu_custom_call.1} parent=81 // loop_header_branch
                  %658 = sbr.rel (%p655) target = $region89
                $region86: #{tpu_custom_call.1} parent=81 // loop_body
                  %v662 = vld [vmem:[%s660] sm:$0xff]
                  %663 = vst [vmem:[%s661] sm:$0xff] %v662
                  %v664 = vld [vmem:[%s660 + $0x8] sm:$0xff]
                  %665 = vst [vmem:[%s661 + $0x8] sm:$0xff] %v664
                  %v666 = vld [vmem:[%s660 + $0x10] sm:$0xff]
                  %667 = vst [vmem:[%s661 + $0x10] sm:$0xff] %v666
                  %s668 = sadd.s32 1, %s659
                  %p669 = scmp.ge.s32.totalorder %s668, %s651
                  %s670 = scalar_select %p669, 0, %s668
                  %s671 = smul.u32 %s670, 24
                  %s672 = smul.u32 %s670, 24
                  %s673 = scalar_lea.vmem %s580, %s671 [#allocation2]
                  %s674 = scalar_lea.vmem %s591, %s672
                $region87: #{tpu_custom_call.1} parent=81 // loop_footer
                  %s656 = sadd.s32 %s654, 1
                $region88: #{tpu_custom_call.1} parent=81 // loop_footer_branch
                  %653 = sbr.rel target = $region84
                $region89: #{tpu_custom_call.1} parent=81 // loop_exit
                  _
                %s675 = sdiv.u32.pop %s587, 3
                %s676 = srem.u32.pop %s587, 3
                %s677 = smul.u32 %s675, 3
                %s678 = smul.u32 8, %s677
                %s679 = scalar_lea.vmem %s580, %s678 [#allocation2]
                %s680 = smul.u32 8, %s677
                %s681 = scalar_lea.vmem %s591, %s680
                // While loop
                $region90: #{tpu_custom_call.1} parent=81 // loop_pre_header
                  _
                $region91: #{tpu_custom_call.1} parent=81 // loop_header
                  %s683 = sphi 0, %s685
                  %p684 = scmp.ge.s32.totalorder %s683, %s676
                  %s688 = sphi 0, %s695
                  %s689 = sphi %s679, %s698
                  %s690 = sphi %s681, %s699
                $region92: #{tpu_custom_call.1} parent=81 // loop_header_branch
                  %687 = sbr.rel (%p684) target = $region96
                $region93: #{tpu_custom_call.1} parent=81 // loop_body
                  %v691 = vld [vmem:[%s689] sm:$0xff]
                  %692 = vst [vmem:[%s690] sm:$0xff] %v691
                  %s693 = sadd.s32 1, %s688
                  %p694 = scmp.ge.s32.totalorder %s693, %s676
                  %s695 = scalar_select %p694, 0, %s693
                  %s696 = smul.u32 %s695, 8
                  %s697 = smul.u32 %s695, 8
                  %s698 = scalar_lea.vmem %s679, %s696 [#allocation2]
                  %s699 = scalar_lea.vmem %s681, %s697
                $region94: #{tpu_custom_call.1} parent=81 // loop_footer
                  %s685 = sadd.s32 %s683, 1
                $region95: #{tpu_custom_call.1} parent=81 // loop_footer_branch
                  %682 = sbr.rel target = $region91
                $region96: #{tpu_custom_call.1} parent=81 // loop_exit
                  _
              $region82: #{tpu_custom_call.1} parent=59 // pred_fallthru
                _
              // Predicated region
              $region97: #{tpu_custom_call.1} parent=59 // pred_check
                _
              $region98: #{tpu_custom_call.1} parent=59 // pred_check_branch
                %701 = sbr.rel target = $region100
              $region99: #{tpu_custom_call.1} parent=59 // pred_region
                _
              $region100: #{tpu_custom_call.1} parent=59 // pred_fallthru
                _
            $region60: #{tpu_custom_call.1} parent=55 // pred_fallthru
              _
            // Predicated region
            $region61: #{tpu_custom_call.1} parent=55 // pred_check
              _
            $region62: #{tpu_custom_call.1} parent=55 // pred_check_branch
              %598 = sbr.rel target = $region64
            $region63: #{tpu_custom_call.1} parent=55 // pred_region
              %s600 = sdiv.u32.pop %s587, 3
              %s601 = srem.u32.pop %s587, 3
              // While loop
              $region65: #{tpu_custom_call.1} parent=63 // loop_pre_header
                _
              $region66: #{tpu_custom_call.1} parent=63 // loop_header
                %s603 = sphi 0, %s605
                %p604 = scmp.ge.s32.totalorder %s603, %s600
                %s608 = sphi 0, %s619
                %s609 = sphi %s580, %s622
                %s610 = sphi %s591, %s623
              $region67: #{tpu_custom_call.1} parent=63 // loop_header_branch
                %607 = sbr.rel (%p604) target = $region71
              $region68: #{tpu_custom_call.1} parent=63 // loop_body
                %v611 = vld [vmem:[%s609] sm:$0xff]
                %612 = vst [vmem:[%s610] sm:$0xff] %v611
                %v613 = vld [vmem:[%s609 + $0x8] sm:$0xff]
                %614 = vst [vmem:[%s610 + $0x8] sm:$0xff] %v613
                %v615 = vld [vmem:[%s609 + $0x10] sm:$0xff]
                %616 = vst [vmem:[%s610 + $0x10] sm:$0xff] %v615
                %s617 = sadd.s32 1, %s608
                %p618 = scmp.ge.s32.totalorder %s617, %s600
                %s619 = scalar_select %p618, 0, %s617
                %s620 = smul.u32 %s619, 24
                %s621 = smul.u32 %s619, 24
                %s622 = scalar_lea.vmem %s580, %s620 [#allocation2]
                %s623 = scalar_lea.vmem %s591, %s621
              $region69: #{tpu_custom_call.1} parent=63 // loop_footer
                %s605 = sadd.s32 %s603, 1
              $region70: #{tpu_custom_call.1} parent=63 // loop_footer_branch
                %602 = sbr.rel target = $region66
              $region71: #{tpu_custom_call.1} parent=63 // loop_exit
                _
              %s624 = sdiv.u32.pop %s587, 3
              %s625 = srem.u32.pop %s587, 3
              %s626 = smul.u32 %s624, 3
              %s627 = smul.u32 8, %s626
              %s628 = scalar_lea.vmem %s580, %s627 [#allocation2]
              %s629 = smul.u32 8, %s626
              %s630 = scalar_lea.vmem %s591, %s629
              // While loop
              $region72: #{tpu_custom_call.1} parent=63 // loop_pre_header
                _
              $region73: #{tpu_custom_call.1} parent=63 // loop_header
                %s632 = sphi 0, %s634
                %p633 = scmp.ge.s32.totalorder %s632, %s625
                %s637 = sphi 0, %s644
                %s638 = sphi %s628, %s647
                %s639 = sphi %s630, %s648
              $region74: #{tpu_custom_call.1} parent=63 // loop_header_branch
                %636 = sbr.rel (%p633) target = $region78
              $region75: #{tpu_custom_call.1} parent=63 // loop_body
                %v640 = vld [vmem:[%s638] sm:$0xff]
                %641 = vst [vmem:[%s639] sm:$0xff] %v640
                %s642 = sadd.s32 1, %s637
                %p643 = scmp.ge.s32.totalorder %s642, %s625
                %s644 = scalar_select %p643, 0, %s642
                %s645 = smul.u32 %s644, 8
                %s646 = smul.u32 %s644, 8
                %s647 = scalar_lea.vmem %s628, %s645 [#allocation2]
                %s648 = scalar_lea.vmem %s630, %s646
              $region76: #{tpu_custom_call.1} parent=63 // loop_footer
                %s634 = sadd.s32 %s632, 1
              $region77: #{tpu_custom_call.1} parent=63 // loop_footer_branch
                %631 = sbr.rel target = $region73
              $region78: #{tpu_custom_call.1} parent=63 // loop_exit
                _
            $region64: #{tpu_custom_call.1} parent=55 // pred_fallthru
              _
          $region56: #{tpu_custom_call.1} parent=51 // pred_fallthru
            _
          %702 = vnop
        $region52: #{tpu_custom_call.1} parent=47 // pred_fallthru
          _
      $region48: #{tpu_custom_call.1} parent=5 // pred_fallthru
        _
      %p703 = scmp.le.s32.totalorder 2, %s13
      // Predicated region
      $region101: #{tpu_custom_call.1} parent=5 // pred_check
        %p704 = pneg %p703
      $region102: #{tpu_custom_call.1} parent=5 // pred_check_branch
        %706 = sbr.rel (%p704) target = $region104
      $region103: #{tpu_custom_call.1} parent=5 // pred_region
        %s707 = ssub.s32 %s13, 2
        // Predicated region
        $region105: #{tpu_custom_call.1} parent=103 // pred_check
          %p708 = pneg %p194
        $region106: #{tpu_custom_call.1} parent=103 // pred_check_branch
          %710 = sbr.rel (%p708) target = $region108
        $region107: #{tpu_custom_call.1} parent=103 // pred_region
          %s711 = sand.u32 %s179, 1
          %s712 = sand.u32 %s179, 1
          %s713 = smul.addr %s712, 24
          %s714 = scalar_lea.vmem [#allocation2], %s713
        $region108: #{tpu_custom_call.1} parent=103 // pred_fallthru
          _
      $region104: #{tpu_custom_call.1} parent=5 // pred_fallthru
        _
    $region6: #{tpu_custom_call.1} parent=1 // loop_footer
      %s17 = sadd.s32 1, %s13
    $region7: #{tpu_custom_call.1} parent=1 // loop_footer_branch
      %12 = sbr.rel target = $region3
    $region8: #{tpu_custom_call.1} parent=1 // loop_exit
      _

</llo_original>
